<compile_context>
chip_gen: v5e
topology: v5e:2x2
jax: 0.10.0
libtpu: 0.0.40
codegen_flags: <defaults>
</compile_context>

<pallas_src>
import functools

import jax
import jax.numpy as jnp
from jax.experimental import pallas as pl
from jax.experimental.pallas import tpu as pltpu


def _lstm_fc_kernel(x_ref, wih_ref, whh_ref, b_ref, wfc_ref, bfc_ref,
                    hN_ref, cN_ref, out_ref,
                    h_sc, c_sc, gx_sc,
                    *, seq_len, mask_tail, unroll):
    t_chunk = pl.program_id(0)
    n_chunks = pl.num_programs(0)
    Bp, H = h_sc.shape
    Tc = gx_sc.shape[0] // Bp

    # ---- init carried state on the first time chunk --------------------------
    @pl.when(t_chunk == 0)
    def _init():
        h_sc[...] = jnp.zeros_like(h_sc)
        c_sc[...] = jnp.zeros_like(c_sc)

    # ---- hoisted input projection for this chunk: one MXU matmul -------------
    # bf16 x / bf16 W_ih, f32 accumulation; bias folded once per chunk.
    gx_sc[...] = (jnp.dot(x_ref[...], wih_ref[...],
                          preferred_element_type=jnp.float32)
                  + b_ref[...])                                  # (Tc*Bp, 4H) f32

    w_hh = whh_ref[...]                                          # (H, 4H) bf16
    base = t_chunk * Tc

    def step(s, carry):
        h, c = carry                                             # f32 (Bp, H)
        row = pl.multiple_of(s * Bp, Bp)                         # 8-aligned rows
        gates = gx_sc[pl.ds(row, Bp), :] + jnp.dot(
            h.astype(w_hh.dtype), w_hh,
            preferred_element_type=jnp.float32)                  # (Bp, 4H) f32
        # Gate columns were pre-permuted in the wrapper to [i, f, o | g]:
        # one sigmoid over the contiguous 3H slice, one tanh over the last H.
        sig = jax.nn.sigmoid(gates[:, :3 * H])
        i_g = sig[:, 0 * H:1 * H]
        f_g = sig[:, 1 * H:2 * H]
        o_g = sig[:, 2 * H:3 * H]
        g_g = jnp.tanh(gates[:, 3 * H:4 * H])
        c_new = f_g * c + i_g * g_g
        h_new = o_g * jnp.tanh(c_new)
        if mask_tail:
            valid = (base + s) < seq_len
            h_new = jnp.where(valid, h_new, h)
            c_new = jnp.where(valid, c_new, c)
        return h_new, c_new

    h, c = jax.lax.fori_loop(0, Tc, step, (h_sc[...], c_sc[...]),
                             unroll=unroll)
    h_sc[...] = h
    c_sc[...] = c

    # ---- finalize on the last chunk: write h/c and the fc projection ---------
    @pl.when(t_chunk == n_chunks - 1)
    def _finalize():
        hN_ref[...] = h
        cN_ref[...] = c
        out_ref[...] = (jnp.dot(h.astype(wfc_ref.dtype), wfc_ref[...],
                                preferred_element_type=jnp.float32)
                        + bfc_ref[...])                          # lane-dense store


@functools.partial(jax.jit, static_argnames=("time_chunk",))
def my_model_forward(text, kparams, *, time_chunk=4):
    """Forward pass matching MyModel.forward (the PyTorch `hidden` argument is
    ignored by the original forward, which calls self.lstm(embedding) with zero
    initial state).

    text: int32 (B, T) token ids.
    Returns (out, (h_n, c_n)) with out (B, O), h_n/c_n (1, B, H).
    """
    emb = kparams["embedding"]      # (V, E)   bf16
    w_ih = kparams["w_ih"]          # (E, 4H)  bf16, gate cols [i,f,o|g]
    w_hh = kparams["w_hh"]          # (H, 4H)  bf16, gate cols [i,f,o|g]
    b = kparams["b"]                # (1, 4H)  f32,  gate cols [i,f,o|g]
    w_fc = kparams["w_fc"]          # (H, O)   bf16
    b_fc = kparams["b_fc"]          # (1, O)   f32

    B, T = text.shape
    E = emb.shape[1]
    H = w_hh.shape[0]
    O = w_fc.shape[1]

    # Batch padded to a full sublane tile; time padded to a whole no. of chunks.
    Bp = max(8, ((B + 7) // 8) * 8)
    Tc = max(1, min(time_chunk, T))
    n_chunks = (T + Tc - 1) // Tc
    T_pad = n_chunks * Tc

    # Lane-pad the fc so the main output store is lane-dense (unmasked vst).
    O_pad = max(128, ((O + 127) // 128) * 128)
    w_fc_p = jnp.pad(w_fc, ((0, 0), (0, O_pad - O)))
    b_fc_p = jnp.pad(b_fc, ((0, 0), (0, O_pad - O)))

    # Padded rows/steps use token 0; padded rows are independent (sliced off),
    # padded time steps are masked inside the kernel.
    text_p = jnp.pad(text, ((0, Bp - B), (0, T_pad - T)))
    # Time-major embedding gather (bf16): rows t*Bp:(t+1)*Bp belong to step t.
    idx = jnp.transpose(text_p).reshape(-1)                 # (T_pad*Bp,)
    x = jnp.take(emb, idx, axis=0)                          # (T_pad*Bp, E) bf16

    kernel = functools.partial(
        _lstm_fc_kernel,
        seq_len=T,
        mask_tail=(T_pad != T),
        unroll=min(4, Tc),
    )

    grid_spec = pltpu.PrefetchScalarGridSpec(
        num_scalar_prefetch=0,
        grid=(n_chunks,),                                   # time chunks
        in_specs=[
            pl.BlockSpec((Tc * Bp, E), lambda t: (t, 0)),   # x chunk (pipelined)
            pl.BlockSpec((E, 4 * H), lambda t: (0, 0)),
            pl.BlockSpec((H, 4 * H), lambda t: (0, 0)),
            pl.BlockSpec((1, 4 * H), lambda t: (0, 0)),
            pl.BlockSpec((H, O_pad), lambda t: (0, 0)),
            pl.BlockSpec((1, O_pad), lambda t: (0, 0)),
        ],
        out_specs=[
            pl.BlockSpec((Bp, H), lambda t: (0, 0)),
            pl.BlockSpec((Bp, H), lambda t: (0, 0)),
            pl.BlockSpec((Bp, O_pad), lambda t: (0, 0)),
        ],
        scratch_shapes=[
            pltpu.VMEM((Bp, H), jnp.float32),               # h carry
            pltpu.VMEM((Bp, H), jnp.float32),               # c carry
            pltpu.VMEM((Tc * Bp, 4 * H), jnp.float32),      # per-chunk gate buf
        ],
    )

    h_n, c_n, out = pl.pallas_call(
        kernel,
        out_shape=(
            jax.ShapeDtypeStruct((Bp, H), jnp.float32),
            jax.ShapeDtypeStruct((Bp, H), jnp.float32),
            jax.ShapeDtypeStruct((Bp, O_pad), jnp.float32),
        ),
        grid_spec=grid_spec,
        compiler_params=pltpu.CompilerParams(
            dimension_semantics=("arbitrary",),             # carried h/c state
            vmem_limit_bytes=32 * 1024 * 1024,
        ),
    )(x, w_ih, w_hh, b, w_fc_p, b_fc_p)

    # Drop padding; PyTorch LSTM returns hidden as (num_layers=1, B, H).
    out = out[:B, :O]
    h_n = h_n[:B]
    c_n = c_n[:B]
    return out, (h_n[None, :, :], c_n[None, :, :])


# ----------------------------- parameter helpers ------------------------------

def make_params(key, vocab_size, embed_size, hidden_size, output_size):
    """PyTorch-layout f32 parameters (used directly by the reference)."""
    k = jax.random.split(key, 7)
    bound = 1.0 / jnp.sqrt(hidden_size)
    emb = jax.random.normal(k[0], (vocab_size, embed_size), jnp.float32)
    w_ih = jax.random.uniform(k[1], (4 * hidden_size, embed_size), jnp.float32,
                              -bound, bound)
    w_hh = jax.random.uniform(k[2], (4 * hidden_size, hidden_size), jnp.float32,
                              -bound, bound)
    b_ih = jax.random.uniform(k[3], (4 * hidden_size,), jnp.float32, -bound, bound)
    b_hh = jax.random.uniform(k[4], (4 * hidden_size,), jnp.float32, -bound, bound)
    w_fc = jax.random.uniform(k[5], (output_size, hidden_size), jnp.float32,
                              -bound, bound)
    b_fc = jax.random.uniform(k[6], (output_size,), jnp.float32, -bound, bound)
    return {"embedding": emb, "w_ih": w_ih, "w_hh": w_hh,
            "b_ih": b_ih, "b_hh": b_hh, "w_fc": w_fc, "b_fc": b_fc}


def prepare_kernel_params(tp):
    """Kernel layout: transposed weights, gate columns permuted [i,f,g,o] ->
    [i,f,o|g], bf16 matmul inputs, combined bias kept f32."""
    def permute_gates(a):                    # (..., 4H) -> [i, f, o | g]
        i, f, g, o = jnp.split(a, 4, axis=-1)
        return jnp.concatenate([i, f, o, g], axis=-1)

    w_ih = permute_gates(tp["w_ih"].T).astype(jnp.bfloat16)          # (E, 4H)
    w_hh = permute_gates(tp["w_hh"].T).astype(jnp.bfloat16)          # (H, 4H)
    b = permute_gates((tp["b_ih"] + tp["b_hh"])[None, :])            # (1, 4H) f32
    return {
        "embedding": tp["embedding"].astype(jnp.bfloat16),           # (V, E)
        "w_ih": w_ih,
        "w_hh": w_hh,
        "b": b.astype(jnp.float32),
        "w_fc": tp["w_fc"].T.astype(jnp.bfloat16),                   # (H, O)
        "b_fc": tp["b_fc"][None, :].astype(jnp.float32),             # (1, O)
    }


def _reference_forward(text, tp):
    """Pure-JAX f32 reference (PyTorch-layout weights, lax.scan LSTM)."""
    emb, w_ih, w_hh = tp["embedding"], tp["w_ih"], tp["w_hh"]
    b = tp["b_ih"] + tp["b_hh"]
    w_fc, b_fc = tp["w_fc"], tp["b_fc"]
    x = jnp.take(emb, text, axis=0)                  # (B, T, E)
    B = x.shape[0]
    H = w_hh.shape[1]

    def step(carry, x_t):
        h, c = carry
        gates = x_t @ w_ih.T + h @ w_hh.T + b
        i = jax.nn.sigmoid(gates[:, 0 * H:1 * H])
        f = jax.nn.sigmoid(gates[:, 1 * H:2 * H])
        g = jnp.tanh(gates[:, 2 * H:3 * H])
        o = jax.nn.sigmoid(gates[:, 3 * H:4 * H])
        c = f * c + i * g
        h = o * jnp.tanh(c)
        return (h, c), None

    h0 = jnp.zeros((B, H), jnp.float32)
    c0 = jnp.zeros((B, H), jnp.float32)
    (h_n, c_n), _ = jax.lax.scan(step, (h0, c0), jnp.transpose(x, (1, 0, 2)))
    out = h_n @ w_fc.T + b_fc
    return out, (h_n[None], c_n[None])


if __name__ == "__main__":
    vocab_size, embed_size, hidden_size, layer, output_size = 50, 32, 32, 1, 2
    batch, seq = 2, 8

    key = jax.random.PRNGKey(0)
    pkey, tkey = jax.random.split(key)
    torch_params = make_params(pkey, vocab_size, embed_size, hidden_size,
                               output_size)
    kparams = prepare_kernel_params(torch_params)
    text = jax.random.randint(tkey, (batch, seq), 0, vocab_size, jnp.int32)

    out, (h_n, c_n) = my_model_forward(text, kparams, time_chunk=4)
    jax.block_until_ready((out, h_n, c_n))

    # Sanity check against the pure-JAX f32 reference.  Tolerance is loosened
    # because the kernel uses bf16 matmul inputs (f32 accumulation / state).
    out_ref, (h_ref, c_ref) = _reference_forward(text, torch_params)
    assert jnp.allclose(out, out_ref, atol=5e-2), "out mismatch"
    assert jnp.allclose(h_n, h_ref, atol=5e-2), "h_n mismatch"
    assert jnp.allclose(c_n, c_ref, atol=5e-2), "c_n mismatch"

    print("KERNEL_OK")
</pallas_src>

<mosaic_0001>
module attributes {stable_mosaic.version = 11 : i64} {
  func.func @_lstm_fc_kernel(%arg0: i32, %arg1: memref<32x32xbf16, #tpu.memory_space<vmem>>, %arg2: memref<32x128xbf16, #tpu.memory_space<vmem>>, %arg3: memref<32x128xbf16, #tpu.memory_space<vmem>>, %arg4: memref<1x128xf32, #tpu.memory_space<vmem>>, %arg5: memref<32x128xbf16, #tpu.memory_space<vmem>>, %arg6: memref<1x128xf32, #tpu.memory_space<vmem>>, %arg7: memref<8x32xf32, #tpu.memory_space<vmem>>, %arg8: memref<8x32xf32, #tpu.memory_space<vmem>>, %arg9: memref<8x128xf32, #tpu.memory_space<vmem>>, %arg10: memref<8x32xf32, #tpu.memory_space<vmem>>, %arg11: memref<8x32xf32, #tpu.memory_space<vmem>>, %arg12: memref<32x128xf32, #tpu.memory_space<vmem>>) attributes {dimension_semantics = [#tpu.dimension_semantics<arbitrary>], iteration_bounds = array<i64: 2>, scalar_prefetch = 0 : i64, scratch_operands = 3 : i64, tpu.core_type = #tpu.core_type<tc>, window_params = [{transform_indices = @transform_0, window_bounds = array<i64: 32, 32>}, {pipeline_mode = #tpu.pipeline_mode<synchronous>, transform_indices = @transform_1, window_bounds = array<i64: 32, 128>}, {pipeline_mode = #tpu.pipeline_mode<synchronous>, transform_indices = @transform_2, window_bounds = array<i64: 32, 128>}, {pipeline_mode = #tpu.pipeline_mode<synchronous>, transform_indices = @transform_3, window_bounds = array<i64: 1, 128>}, {pipeline_mode = #tpu.pipeline_mode<synchronous>, transform_indices = @transform_4, window_bounds = array<i64: 32, 128>}, {pipeline_mode = #tpu.pipeline_mode<synchronous>, transform_indices = @transform_5, window_bounds = array<i64: 1, 128>}, {pipeline_mode = #tpu.pipeline_mode<synchronous>, transform_indices = @transform_6, window_bounds = array<i64: 8, 32>}, {pipeline_mode = #tpu.pipeline_mode<synchronous>, transform_indices = @transform_7, window_bounds = array<i64: 8, 32>}, {pipeline_mode = #tpu.pipeline_mode<synchronous>, transform_indices = @transform_8, window_bounds = array<i64: 8, 128>}]} {
    %c0_i32 = arith.constant 0 : i32
    %0 = arith.cmpi eq, %arg0, %c0_i32 : i32
    %1 = arith.extui %0 : i1 to i32
    %c0_i32_0 = arith.constant 0 : i32
    %2 = arith.cmpi ne, %1, %c0_i32_0 : i32
    scf.if %2 {
      %cst_36 = arith.constant 0.000000e+00 : f32
      %110 = vector.broadcast %cst_36 : f32 to vector<8x32xf32>
      %c0_37 = arith.constant 0 : index
      %c0_38 = arith.constant 0 : index
      %111 = vector.load %arg10[%c0_37, %c0_38] : memref<8x32xf32, #tpu.memory_space<vmem>>, vector<8x32xf32>
      tpu.vector_store %arg10[%c0_37, %c0_38], %110 {strides = array<i32>} : memref<8x32xf32, #tpu.memory_space<vmem>>, vector<8x32xf32>,
      %cst_39 = arith.constant 0.000000e+00 : f32
      %112 = vector.broadcast %cst_39 : f32 to vector<8x32xf32>
      %c0_40 = arith.constant 0 : index
      %c0_41 = arith.constant 0 : index
      %113 = vector.load %arg11[%c0_40, %c0_41] : memref<8x32xf32, #tpu.memory_space<vmem>>, vector<8x32xf32>
      tpu.vector_store %arg11[%c0_40, %c0_41], %112 {strides = array<i32>} : memref<8x32xf32, #tpu.memory_space<vmem>>, vector<8x32xf32>,
    } else {
    }
    %c0 = arith.constant 0 : index
    %c0_1 = arith.constant 0 : index
    %3 = vector.load %arg1[%c0, %c0_1] : memref<32x32xbf16, #tpu.memory_space<vmem>>, vector<32x32xbf16>
    %c0_2 = arith.constant 0 : index
    %c0_3 = arith.constant 0 : index
    %4 = vector.load %arg2[%c0_2, %c0_3] : memref<32x128xbf16, #tpu.memory_space<vmem>>, vector<32x128xbf16>
    %cst = arith.constant dense<0.000000e+00> : vector<32x128xf32>
    %5 = tpu.matmul %3, %4, %cst {dimension_numbers = #tpu.dot_dimension_numbers<[1], [0], [0], [1], [0, 0, 1, 1], [], []>} : vector<32x32xbf16>, vector<32x128xbf16>, vector<32x128xf32> -> vector<32x128xf32>
    %c0_4 = arith.constant 0 : index
    %c0_5 = arith.constant 0 : index
    %6 = vector.load %arg4[%c0_4, %c0_5] : memref<1x128xf32, #tpu.memory_space<vmem>>, vector<1x128xf32>
    %7 = vector.broadcast %6 : vector<1x128xf32> to vector<32x128xf32>
    %8 = arith.addf %5, %7 : vector<32x128xf32>
    %c0_6 = arith.constant 0 : index
    %c0_7 = arith.constant 0 : index
    %9 = vector.load %arg12[%c0_6, %c0_7] : memref<32x128xf32, #tpu.memory_space<vmem>>, vector<32x128xf32>
    tpu.vector_store %arg12[%c0_6, %c0_7], %8 {strides = array<i32>} : memref<32x128xf32, #tpu.memory_space<vmem>>, vector<32x128xf32>,
    %c0_8 = arith.constant 0 : index
    %c0_9 = arith.constant 0 : index
    %10 = vector.load %arg3[%c0_8, %c0_9] : memref<32x128xbf16, #tpu.memory_space<vmem>>, vector<32x128xbf16>
    %c0_10 = arith.constant 0 : index
    %c0_11 = arith.constant 0 : index
    %11 = vector.load %arg10[%c0_10, %c0_11] : memref<8x32xf32, #tpu.memory_space<vmem>>, vector<8x32xf32>
    %c0_12 = arith.constant 0 : index
    %c0_13 = arith.constant 0 : index
    %12 = vector.load %arg11[%c0_12, %c0_13] : memref<8x32xf32, #tpu.memory_space<vmem>>, vector<8x32xf32>
    %c0_i32_14 = arith.constant 0 : i32
    %c8_i32 = arith.constant 8 : i32
    %13 = arith.muli %c0_i32_14, %c8_i32 : i32
    %14 = tpu.assume_multiple %13, 8 : i32
    %15 = arith.index_cast %14 : i32 to index
    %c0_15 = arith.constant 0 : index
    %16 = vector.load %arg12[%15, %c0_15] : memref<32x128xf32, #tpu.memory_space<vmem>>, vector<8x128xf32>
    %17 = arith.truncf %11 : vector<8x32xf32> to vector<8x32xbf16>
    %cst_16 = arith.constant dense<0.000000e+00> : vector<8x128xf32>
    %18 = tpu.matmul %17, %10, %cst_16 {dimension_numbers = #tpu.dot_dimension_numbers<[1], [0], [0], [1], [0, 0, 1, 1], [], []>} : vector<8x32xbf16>, vector<32x128xbf16>, vector<8x128xf32> -> vector<8x128xf32>
    %19 = arith.addf %16, %18 : vector<8x128xf32>
    %20 = vector.extract_strided_slice %19 {offsets = [0, 0], sizes = [8, 96], strides = [1, 1]} : vector<8x128xf32> to vector<8x96xf32>
    %21 = arith.negf %20 : vector<8x96xf32>
    %22 = math.exp %21 : vector<8x96xf32>
    %cst_17 = arith.constant 1.000000e+00 : f32
    %23 = vector.broadcast %cst_17 : f32 to vector<8x96xf32>
    %24 = arith.addf %23, %22 : vector<8x96xf32>
    %25 = arith.divf %23, %24 : vector<8x96xf32>
    %26 = vector.extract_strided_slice %25 {offsets = [0, 0], sizes = [8, 32], strides = [1, 1]} : vector<8x96xf32> to vector<8x32xf32>
    %27 = vector.extract_strided_slice %25 {offsets = [0, 32], sizes = [8, 32], strides = [1, 1]} : vector<8x96xf32> to vector<8x32xf32>
    %28 = vector.extract_strided_slice %25 {offsets = [0, 64], sizes = [8, 32], strides = [1, 1]} : vector<8x96xf32> to vector<8x32xf32>
    %29 = vector.extract_strided_slice %19 {offsets = [0, 96], sizes = [8, 32], strides = [1, 1]} : vector<8x128xf32> to vector<8x32xf32>
    %30 = math.tanh %29 : vector<8x32xf32>
    %31 = arith.mulf %27, %12 : vector<8x32xf32>
    %32 = arith.mulf %26, %30 : vector<8x32xf32>
    %33 = arith.addf %31, %32 : vector<8x32xf32>
    %34 = math.tanh %33 : vector<8x32xf32>
    %35 = arith.mulf %28, %34 : vector<8x32xf32>
    %c1_i32 = arith.constant 1 : i32
    %c8_i32_18 = arith.constant 8 : i32
    %36 = arith.muli %c1_i32, %c8_i32_18 : i32
    %37 = tpu.assume_multiple %36, 8 : i32
    %38 = arith.index_cast %37 : i32 to index
    %c0_19 = arith.constant 0 : index
    %39 = vector.load %arg12[%38, %c0_19] : memref<32x128xf32, #tpu.memory_space<vmem>>, vector<8x128xf32>
    %40 = arith.truncf %35 : vector<8x32xf32> to vector<8x32xbf16>
    %cst_20 = arith.constant dense<0.000000e+00> : vector<8x128xf32>
    %41 = tpu.matmul %40, %10, %cst_20 {dimension_numbers = #tpu.dot_dimension_numbers<[1], [0], [0], [1], [0, 0, 1, 1], [], []>} : vector<8x32xbf16>, vector<32x128xbf16>, vector<8x128xf32> -> vector<8x128xf32>
    %42 = arith.addf %39, %41 : vector<8x128xf32>
    %43 = vector.extract_strided_slice %42 {offsets = [0, 0], sizes = [8, 96], strides = [1, 1]} : vector<8x128xf32> to vector<8x96xf32>
    %44 = arith.negf %43 : vector<8x96xf32>
    %45 = math.exp %44 : vector<8x96xf32>
    %cst_21 = arith.constant 1.000000e+00 : f32
    %46 = vector.broadcast %cst_21 : f32 to vector<8x96xf32>
    %47 = arith.addf %46, %45 : vector<8x96xf32>
    %48 = arith.divf %46, %47 : vector<8x96xf32>
    %49 = vector.extract_strided_slice %48 {offsets = [0, 0], sizes = [8, 32], strides = [1, 1]} : vector<8x96xf32> to vector<8x32xf32>
    %50 = vector.extract_strided_slice %48 {offsets = [0, 32], sizes = [8, 32], strides = [1, 1]} : vector<8x96xf32> to vector<8x32xf32>
    %51 = vector.extract_strided_slice %48 {offsets = [0, 64], sizes = [8, 32], strides = [1, 1]} : vector<8x96xf32> to vector<8x32xf32>
    %52 = vector.extract_strided_slice %42 {offsets = [0, 96], sizes = [8, 32], strides = [1, 1]} : vector<8x128xf32> to vector<8x32xf32>
    %53 = math.tanh %52 : vector<8x32xf32>
    %54 = arith.mulf %50, %33 : vector<8x32xf32>
    %55 = arith.mulf %49, %53 : vector<8x32xf32>
    %56 = arith.addf %54, %55 : vector<8x32xf32>
    %57 = math.tanh %56 : vector<8x32xf32>
    %58 = arith.mulf %51, %57 : vector<8x32xf32>
    %c2_i32 = arith.constant 2 : i32
    %c8_i32_22 = arith.constant 8 : i32
    %59 = arith.muli %c2_i32, %c8_i32_22 : i32
    %60 = tpu.assume_multiple %59, 8 : i32
    %61 = arith.index_cast %60 : i32 to index
    %c0_23 = arith.constant 0 : index
    %62 = vector.load %arg12[%61, %c0_23] : memref<32x128xf32, #tpu.memory_space<vmem>>, vector<8x128xf32>
    %63 = arith.truncf %58 : vector<8x32xf32> to vector<8x32xbf16>
    %cst_24 = arith.constant dense<0.000000e+00> : vector<8x128xf32>
    %64 = tpu.matmul %63, %10, %cst_24 {dimension_numbers = #tpu.dot_dimension_numbers<[1], [0], [0], [1], [0, 0, 1, 1], [], []>} : vector<8x32xbf16>, vector<32x128xbf16>, vector<8x128xf32> -> vector<8x128xf32>
    %65 = arith.addf %62, %64 : vector<8x128xf32>
    %66 = vector.extract_strided_slice %65 {offsets = [0, 0], sizes = [8, 96], strides = [1, 1]} : vector<8x128xf32> to vector<8x96xf32>
    %67 = arith.negf %66 : vector<8x96xf32>
    %68 = math.exp %67 : vector<8x96xf32>
    %cst_25 = arith.constant 1.000000e+00 : f32
    %69 = vector.broadcast %cst_25 : f32 to vector<8x96xf32>
    %70 = arith.addf %69, %68 : vector<8x96xf32>
    %71 = arith.divf %69, %70 : vector<8x96xf32>
    %72 = vector.extract_strided_slice %71 {offsets = [0, 0], sizes = [8, 32], strides = [1, 1]} : vector<8x96xf32> to vector<8x32xf32>
    %73 = vector.extract_strided_slice %71 {offsets = [0, 32], sizes = [8, 32], strides = [1, 1]} : vector<8x96xf32> to vector<8x32xf32>
    %74 = vector.extract_strided_slice %71 {offsets = [0, 64], sizes = [8, 32], strides = [1, 1]} : vector<8x96xf32> to vector<8x32xf32>
    %75 = vector.extract_strided_slice %65 {offsets = [0, 96], sizes = [8, 32], strides = [1, 1]} : vector<8x128xf32> to vector<8x32xf32>
    %76 = math.tanh %75 : vector<8x32xf32>
    %77 = arith.mulf %73, %56 : vector<8x32xf32>
    %78 = arith.mulf %72, %76 : vector<8x32xf32>
    %79 = arith.addf %77, %78 : vector<8x32xf32>
    %80 = math.tanh %79 : vector<8x32xf32>
    %81 = arith.mulf %74, %80 : vector<8x32xf32>
    %c3_i32 = arith.constant 3 : i32
    %c8_i32_26 = arith.constant 8 : i32
    %82 = arith.muli %c3_i32, %c8_i32_26 : i32
    %83 = tpu.assume_multiple %82, 8 : i32
    %84 = arith.index_cast %83 : i32 to index
    %c0_27 = arith.constant 0 : index
    %85 = vector.load %arg12[%84, %c0_27] : memref<32x128xf32, #tpu.memory_space<vmem>>, vector<8x128xf32>
    %86 = arith.truncf %81 : vector<8x32xf32> to vector<8x32xbf16>
    %cst_28 = arith.constant dense<0.000000e+00> : vector<8x128xf32>
    %87 = tpu.matmul %86, %10, %cst_28 {dimension_numbers = #tpu.dot_dimension_numbers<[1], [0], [0], [1], [0, 0, 1, 1], [], []>} : vector<8x32xbf16>, vector<32x128xbf16>, vector<8x128xf32> -> vector<8x128xf32>
    %88 = arith.addf %85, %87 : vector<8x128xf32>
    %89 = vector.extract_strided_slice %88 {offsets = [0, 0], sizes = [8, 96], strides = [1, 1]} : vector<8x128xf32> to vector<8x96xf32>
    %90 = arith.negf %89 : vector<8x96xf32>
    %91 = math.exp %90 : vector<8x96xf32>
    %cst_29 = arith.constant 1.000000e+00 : f32
    %92 = vector.broadcast %cst_29 : f32 to vector<8x96xf32>
    %93 = arith.addf %92, %91 : vector<8x96xf32>
    %94 = arith.divf %92, %93 : vector<8x96xf32>
    %95 = vector.extract_strided_slice %94 {offsets = [0, 0], sizes = [8, 32], strides = [1, 1]} : vector<8x96xf32> to vector<8x32xf32>
    %96 = vector.extract_strided_slice %94 {offsets = [0, 32], sizes = [8, 32], strides = [1, 1]} : vector<8x96xf32> to vector<8x32xf32>
    %97 = vector.extract_strided_slice %94 {offsets = [0, 64], sizes = [8, 32], strides = [1, 1]} : vector<8x96xf32> to vector<8x32xf32>
    %98 = vector.extract_strided_slice %88 {offsets = [0, 96], sizes = [8, 32], strides = [1, 1]} : vector<8x128xf32> to vector<8x32xf32>
    %99 = math.tanh %98 : vector<8x32xf32>
    %100 = arith.mulf %96, %79 : vector<8x32xf32>
    %101 = arith.mulf %95, %99 : vector<8x32xf32>
    %102 = arith.addf %100, %101 : vector<8x32xf32>
    %103 = math.tanh %102 : vector<8x32xf32>
    %104 = arith.mulf %97, %103 : vector<8x32xf32>
    %c4_i32 = arith.constant 4 : i32
    %c0_30 = arith.constant 0 : index
    %c0_31 = arith.constant 0 : index
    %105 = vector.load %arg10[%c0_30, %c0_31] : memref<8x32xf32, #tpu.memory_space<vmem>>, vector<8x32xf32>
    tpu.vector_store %arg10[%c0_30, %c0_31], %104 {strides = array<i32>} : memref<8x32xf32, #tpu.memory_space<vmem>>, vector<8x32xf32>,
    %c0_32 = arith.constant 0 : index
    %c0_33 = arith.constant 0 : index
    %106 = vector.load %arg11[%c0_32, %c0_33] : memref<8x32xf32, #tpu.memory_space<vmem>>, vector<8x32xf32>
    tpu.vector_store %arg11[%c0_32, %c0_33], %102 {strides = array<i32>} : memref<8x32xf32, #tpu.memory_space<vmem>>, vector<8x32xf32>,
    %c1_i32_34 = arith.constant 1 : i32
    %107 = arith.cmpi eq, %arg0, %c1_i32_34 : i32
    %108 = arith.extui %107 : i1 to i32
    %c0_i32_35 = arith.constant 0 : i32
    %109 = arith.cmpi ne, %108, %c0_i32_35 : i32
    scf.if %109 {
      %c0_36 = arith.constant 0 : index
      %c0_37 = arith.constant 0 : index
      %110 = vector.load %arg7[%c0_36, %c0_37] : memref<8x32xf32, #tpu.memory_space<vmem>>, vector<8x32xf32>
      tpu.vector_store %arg7[%c0_36, %c0_37], %104 {strides = array<i32>} : memref<8x32xf32, #tpu.memory_space<vmem>>, vector<8x32xf32>,
      %c0_38 = arith.constant 0 : index
      %c0_39 = arith.constant 0 : index
      %111 = vector.load %arg8[%c0_38, %c0_39] : memref<8x32xf32, #tpu.memory_space<vmem>>, vector<8x32xf32>
      tpu.vector_store %arg8[%c0_38, %c0_39], %102 {strides = array<i32>} : memref<8x32xf32, #tpu.memory_space<vmem>>, vector<8x32xf32>,
      %112 = arith.truncf %104 : vector<8x32xf32> to vector<8x32xbf16>
      %c0_40 = arith.constant 0 : index
      %c0_41 = arith.constant 0 : index
      %113 = vector.load %arg5[%c0_40, %c0_41] : memref<32x128xbf16, #tpu.memory_space<vmem>>, vector<32x128xbf16>
      %cst_42 = arith.constant dense<0.000000e+00> : vector<8x128xf32>
      %114 = tpu.matmul %112, %113, %cst_42 {dimension_numbers = #tpu.dot_dimension_numbers<[1], [0], [0], [1], [0, 0, 1, 1], [], []>} : vector<8x32xbf16>, vector<32x128xbf16>, vector<8x128xf32> -> vector<8x128xf32>
      %c0_43 = arith.constant 0 : index
      %c0_44 = arith.constant 0 : index
      %115 = vector.load %arg6[%c0_43, %c0_44] : memref<1x128xf32, #tpu.memory_space<vmem>>, vector<1x128xf32>
      %116 = vector.broadcast %115 : vector<1x128xf32> to vector<8x128xf32>
      %117 = arith.addf %114, %116 : vector<8x128xf32>
      %c0_45 = arith.constant 0 : index
      %c0_46 = arith.constant 0 : index
      %118 = vector.load %arg9[%c0_45, %c0_46] : memref<8x128xf32, #tpu.memory_space<vmem>>, vector<8x128xf32>
      tpu.vector_store %arg9[%c0_45, %c0_46], %117 {strides = array<i32>} : memref<8x128xf32, #tpu.memory_space<vmem>>, vector<8x128xf32>,
    } else {
    }
    return
  }
  func.func @transform_0(%arg0: i32) -> (i32, i32) {
    %c0_i32 = arith.constant 0 : i32
    %c0_i32_0 = arith.constant 0 : i32
    return %arg0, %c0_i32 : i32, i32
  }
  func.func @transform_1(%arg0: i32) -> (i32, i32) {
    %c0_i32 = arith.constant 0 : i32
    %c0_i32_0 = arith.constant 0 : i32
    %c0_i32_1 = arith.constant 0 : i32
    return %c0_i32, %c0_i32_0 : i32, i32
  }
  func.func @transform_2(%arg0: i32) -> (i32, i32) {
    %c0_i32 = arith.constant 0 : i32
    %c0_i32_0 = arith.constant 0 : i32
    %c0_i32_1 = arith.constant 0 : i32
    return %c0_i32, %c0_i32_0 : i32, i32
  }
  func.func @transform_3(%arg0: i32) -> (i32, i32) {
    %c0_i32 = arith.constant 0 : i32
    %c0_i32_0 = arith.constant 0 : i32
    %c0_i32_1 = arith.constant 0 : i32
    return %c0_i32, %c0_i32_0 : i32, i32
  }
  func.func @transform_4(%arg0: i32) -> (i32, i32) {
    %c0_i32 = arith.constant 0 : i32
    %c0_i32_0 = arith.constant 0 : i32
    %c0_i32_1 = arith.constant 0 : i32
    return %c0_i32, %c0_i32_0 : i32, i32
  }
  func.func @transform_5(%arg0: i32) -> (i32, i32) {
    %c0_i32 = arith.constant 0 : i32
    %c0_i32_0 = arith.constant 0 : i32
    %c0_i32_1 = arith.constant 0 : i32
    return %c0_i32, %c0_i32_0 : i32, i32
  }
  func.func @transform_6(%arg0: i32) -> (i32, i32) {
    %c0_i32 = arith.constant 0 : i32
    %c0_i32_0 = arith.constant 0 : i32
    %c0_i32_1 = arith.constant 0 : i32
    return %c0_i32, %c0_i32_0 : i32, i32
  }
  func.func @transform_7(%arg0: i32) -> (i32, i32) {
    %c0_i32 = arith.constant 0 : i32
    %c0_i32_0 = arith.constant 0 : i32
    %c0_i32_1 = arith.constant 0 : i32
    return %c0_i32, %c0_i32_0 : i32, i32
  }
  func.func @transform_8(%arg0: i32) -> (i32, i32) {
    %c0_i32 = arith.constant 0 : i32
    %c0_i32_0 = arith.constant 0 : i32
    %c0_i32_1 = arith.constant 0 : i32
    return %c0_i32, %c0_i32_0 : i32, i32
  }
}

</mosaic_0001>

<llo_original>
// kernel: my_model_forward.1
$region0: #{my_model_forward.1}
  #allocation0 [shape = 'u32[]', space=smem, size = 0x4, offset = 0x4, fixed_abs, tag = 'smem constant byte address 0x4 - core index']
  #allocation1 [shape = 'u32[72,128]{1,0:T(1,128)}', space=vmem, size = 0x9000, scoped, tag = 'internal scratch']
  #allocation2 [shape = 'f32[8,32]{1,0:T(8,128)}', space=vmem, size = 0x1000, scoped, tag = 'scratch operand']
  #allocation3 [shape = 'f32[8,32]{1,0:T(8,128)}', space=vmem, size = 0x1000, scoped, tag = 'scratch operand']
  #allocation4 [shape = 'f32[32,128]{1,0:T(8,128)}', space=vmem, size = 0x4000, scoped, tag = 'scratch operand']
  %s0 = inlined_call_operand.vmem [shape: bf16[64,32], index: 0, kind: input, shape index: {}]
  %s1 = inlined_call_operand.vmem [shape: bf16[32,128], index: 1, kind: input, shape index: {}]
  %s2 = inlined_call_operand.vmem [shape: bf16[32,128], index: 2, kind: input, shape index: {}]
  %s3 = inlined_call_operand.vmem [shape: f32[1,128], index: 3, kind: input, shape index: {}]
  %s4 = inlined_call_operand.vmem [shape: bf16[32,128], index: 4, kind: input, shape index: {}]
  %s5 = inlined_call_operand.vmem [shape: f32[1,128], index: 5, kind: input, shape index: {}]
  %s6 = inlined_call_operand.vmem [shape: f32[8,32], index: 6, kind: output, shape index: {0}]
  %s7 = inlined_call_operand.vmem [shape: f32[8,32], index: 7, kind: output, shape index: {1}]
  %s8 = inlined_call_operand.vmem [shape: f32[8,128], index: 8, kind: output, shape index: {2}]
  %9 = xla_tuple %s6, %s7, %s8
  %s10 = sld [smem:[#allocation0]]
  $region81: #{my_model_forward.1} parent=0
    _
  %s12 = ssub.s32 1, %s10
  %s13 = scalar_select 0, %s12, %s10
  loop: start=0, step=1, limit=4
  $region2: #{my_model_forward.1} parent=0 // loop_pre_header
    _
  $region3: #{my_model_forward.1} parent=0 // loop_header
    %s15 = sphi 0, %s19
    %p16 = scmp.ge.s32.totalorder %s15, 4
    %s25 = sphi 0, %s27
    %s28 = sphi 0, %s25
    %s29 = sphi 0, %s28
    %s45 = sphi 0, %s29
    %s49 = sphi 0, %s49
    %s51 = sphi 0, %s49
    %s52 = sphi 0, %s51
    %s66 = sphi 0, %s52
    %s70 = sphi 0, %s70
    %s72 = sphi 0, %s70
    %s73 = sphi 0, %s72
    %s87 = sphi 0, %s73
    %s91 = sphi 0, %s91
    %s93 = sphi 0, %s91
    %s94 = sphi 0, %s93
    %s108 = sphi 0, %s94
    %s112 = sphi 0, %s112
    %s114 = sphi 0, %s112
    %s115 = sphi 0, %s114
    %s129 = sphi 0, %s115
    %s133 = sphi 0, %s133
    %s135 = sphi 0, %s133
    %s136 = sphi 0, %s135
    %s150 = sphi 0, %s136
    %s154 = sphi 0, %s154
    %s156 = sphi 0, %s154
    %s157 = sphi 0, %s156
    %s171 = sphi 0, %s157
    %s175 = sphi 0, %s175
    %s177 = sphi 0, %s175
    %s178 = sphi 0, %s177
    %s192 = sphi 0, %s178
    %s196 = sphi 0, %s196
    %s198 = sphi 0, %s196
    %s199 = sphi 0, %s198
    %s213 = sphi 0, %s199
  $region4: #{my_model_forward.1} parent=0 // loop_header_branch
    %18 = sbr.rel (%p16) target = $region8
  $region5: #{my_model_forward.1} parent=0 // loop_body
    %s20 = ssub.s32 %s15, 1
    %s21 = ssub.s32 %s15, 2
    %s22 = sadd.s32 %s15, 1
    %s23 = ssub.s32 %s15, %s22
    %p24 = scmp.eq.s32.totalorder %s23, 0
    %s26 = sadd.s32 %s25, 1
    %s27 = scalar_select %p24, %s25, %s26
    %p30 = pneg %p24
    %p31 = scmp.eq.s32.totalorder %s15, 1
    %p32 = por %p30, %p31
    %p33 = scmp.ne.s32.totalorder %s25, %s28
    %p34 = scmp.eq.s32.totalorder %s15, 0
    %p35 = por %p33, %p34
    %p36 = scmp.ne.s32.totalorder %s25, %s28
    %p37 = scmp.eq.s32.totalorder %s20, 1
    %p38 = por %p36, %p37
    %p39 = scmp.ne.s32.totalorder %s28, %s29
    %p40 = scmp.eq.s32.totalorder %s20, 0
    %p41 = por %p39, %p40
    %p42 = scmp.ne.s32.totalorder %s28, %s29
    %p43 = scmp.eq.s32.totalorder %s21, 1
    %p44 = por %p42, %p43
    %p46 = scmp.ne.s32.totalorder %s29, %s45
    %p47 = scmp.eq.s32.totalorder %s21, 0
    %p48 = por %p46, %p47
    %s50 = sadd.s32 %s49, 1
    %p53 = scmp.eq.s32.totalorder %s15, 1
    %p54 = scmp.ne.s32.totalorder %s49, %s51
    %p55 = scmp.eq.s32.totalorder %s15, 0
    %p56 = por %p54, %p55
    %p57 = scmp.ne.s32.totalorder %s49, %s51
    %p58 = scmp.eq.s32.totalorder %s20, 1
    %p59 = por %p57, %p58
    %p60 = scmp.ne.s32.totalorder %s51, %s52
    %p61 = scmp.eq.s32.totalorder %s20, 0
    %p62 = por %p60, %p61
    %p63 = scmp.ne.s32.totalorder %s51, %s52
    %p64 = scmp.eq.s32.totalorder %s21, 1
    %p65 = por %p63, %p64
    %p67 = scmp.ne.s32.totalorder %s52, %s66
    %p68 = scmp.eq.s32.totalorder %s21, 0
    %p69 = por %p67, %p68
    %s71 = sadd.s32 %s70, 1
    %p74 = scmp.eq.s32.totalorder %s15, 1
    %p75 = scmp.ne.s32.totalorder %s70, %s72
    %p76 = scmp.eq.s32.totalorder %s15, 0
    %p77 = por %p75, %p76
    %p78 = scmp.ne.s32.totalorder %s70, %s72
    %p79 = scmp.eq.s32.totalorder %s20, 1
    %p80 = por %p78, %p79
    %p81 = scmp.ne.s32.totalorder %s72, %s73
    %p82 = scmp.eq.s32.totalorder %s20, 0
    %p83 = por %p81, %p82
    %p84 = scmp.ne.s32.totalorder %s72, %s73
    %p85 = scmp.eq.s32.totalorder %s21, 1
    %p86 = por %p84, %p85
    %p88 = scmp.ne.s32.totalorder %s73, %s87
    %p89 = scmp.eq.s32.totalorder %s21, 0
    %p90 = por %p88, %p89
    %s92 = sadd.s32 %s91, 1
    %p95 = scmp.eq.s32.totalorder %s15, 1
    %p96 = scmp.ne.s32.totalorder %s91, %s93
    %p97 = scmp.eq.s32.totalorder %s15, 0
    %p98 = por %p96, %p97
    %p99 = scmp.ne.s32.totalorder %s91, %s93
    %p100 = scmp.eq.s32.totalorder %s20, 1
    %p101 = por %p99, %p100
    %p102 = scmp.ne.s32.totalorder %s93, %s94
    %p103 = scmp.eq.s32.totalorder %s20, 0
    %p104 = por %p102, %p103
    %p105 = scmp.ne.s32.totalorder %s93, %s94
    %p106 = scmp.eq.s32.totalorder %s21, 1
    %p107 = por %p105, %p106
    %p109 = scmp.ne.s32.totalorder %s94, %s108
    %p110 = scmp.eq.s32.totalorder %s21, 0
    %p111 = por %p109, %p110
    %s113 = sadd.s32 %s112, 1
    %p116 = scmp.eq.s32.totalorder %s15, 1
    %p117 = scmp.ne.s32.totalorder %s112, %s114
    %p118 = scmp.eq.s32.totalorder %s15, 0
    %p119 = por %p117, %p118
    %p120 = scmp.ne.s32.totalorder %s112, %s114
    %p121 = scmp.eq.s32.totalorder %s20, 1
    %p122 = por %p120, %p121
    %p123 = scmp.ne.s32.totalorder %s114, %s115
    %p124 = scmp.eq.s32.totalorder %s20, 0
    %p125 = por %p123, %p124
    %p126 = scmp.ne.s32.totalorder %s114, %s115
    %p127 = scmp.eq.s32.totalorder %s21, 1
    %p128 = por %p126, %p127
    %p130 = scmp.ne.s32.totalorder %s115, %s129
    %p131 = scmp.eq.s32.totalorder %s21, 0
    %p132 = por %p130, %p131
    %s134 = sadd.s32 %s133, 1
    %p137 = scmp.eq.s32.totalorder %s15, 1
    %p138 = scmp.ne.s32.totalorder %s133, %s135
    %p139 = scmp.eq.s32.totalorder %s15, 0
    %p140 = por %p138, %p139
    %p141 = scmp.ne.s32.totalorder %s133, %s135
    %p142 = scmp.eq.s32.totalorder %s20, 1
    %p143 = por %p141, %p142
    %p144 = scmp.ne.s32.totalorder %s135, %s136
    %p145 = scmp.eq.s32.totalorder %s20, 0
    %p146 = por %p144, %p145
    %p147 = scmp.ne.s32.totalorder %s135, %s136
    %p148 = scmp.eq.s32.totalorder %s21, 1
    %p149 = por %p147, %p148
    %p151 = scmp.ne.s32.totalorder %s136, %s150
    %p152 = scmp.eq.s32.totalorder %s21, 0
    %p153 = por %p151, %p152
    %s155 = sadd.s32 %s154, 1
    %p158 = scmp.eq.s32.totalorder %s15, 1
    %p159 = scmp.ne.s32.totalorder %s154, %s156
    %p160 = scmp.eq.s32.totalorder %s15, 0
    %p161 = por %p159, %p160
    %p162 = scmp.ne.s32.totalorder %s154, %s156
    %p163 = scmp.eq.s32.totalorder %s20, 1
    %p164 = por %p162, %p163
    %p165 = scmp.ne.s32.totalorder %s156, %s157
    %p166 = scmp.eq.s32.totalorder %s20, 0
    %p167 = por %p165, %p166
    %p168 = scmp.ne.s32.totalorder %s156, %s157
    %p169 = scmp.eq.s32.totalorder %s21, 1
    %p170 = por %p168, %p169
    %p172 = scmp.ne.s32.totalorder %s157, %s171
    %p173 = scmp.eq.s32.totalorder %s21, 0
    %p174 = por %p172, %p173
    %s176 = sadd.s32 %s175, 1
    %p179 = scmp.eq.s32.totalorder %s15, 1
    %p180 = scmp.ne.s32.totalorder %s175, %s177
    %p181 = scmp.eq.s32.totalorder %s15, 0
    %p182 = por %p180, %p181
    %p183 = scmp.ne.s32.totalorder %s175, %s177
    %p184 = scmp.eq.s32.totalorder %s20, 1
    %p185 = por %p183, %p184
    %p186 = scmp.ne.s32.totalorder %s177, %s178
    %p187 = scmp.eq.s32.totalorder %s20, 0
    %p188 = por %p186, %p187
    %p189 = scmp.ne.s32.totalorder %s177, %s178
    %p190 = scmp.eq.s32.totalorder %s21, 1
    %p191 = por %p189, %p190
    %p193 = scmp.ne.s32.totalorder %s178, %s192
    %p194 = scmp.eq.s32.totalorder %s21, 0
    %p195 = por %p193, %p194
    %s197 = sadd.s32 %s196, 1
    %p200 = scmp.eq.s32.totalorder %s15, 1
    %p201 = scmp.ne.s32.totalorder %s196, %s198
    %p202 = scmp.eq.s32.totalorder %s15, 0
    %p203 = por %p201, %p202
    %p204 = scmp.ne.s32.totalorder %s196, %s198
    %p205 = scmp.eq.s32.totalorder %s20, 1
    %p206 = por %p204, %p205
    %p207 = scmp.ne.s32.totalorder %s198, %s199
    %p208 = scmp.eq.s32.totalorder %s20, 0
    %p209 = por %p207, %p208
    %p210 = scmp.ne.s32.totalorder %s198, %s199
    %p211 = scmp.eq.s32.totalorder %s21, 1
    %p212 = por %p210, %p211
    %p214 = scmp.ne.s32.totalorder %s199, %s213
    %p215 = scmp.eq.s32.totalorder %s21, 0
    %p216 = por %p214, %p215
    %p217 = scmp.le.s32.totalorder 1, %s15
    %p218 = scmp.lt.s32.totalorder %s15, 3
    %p219 = pnand %p217, %p218
    %p220 = pneg %p219
    // Predicated region
    $region9: #{my_model_forward.1} parent=5 // pred_check
      _
    $region10: #{my_model_forward.1} parent=5 // pred_check_branch
      %222 = sbr.rel (%p219) target = $region12
    $region11: #{my_model_forward.1} parent=5 // pred_region
      %s223 = ssub.s32 %s15, 1
      // Predicated region
      $region13: #{my_model_forward.1} parent=11 // pred_check
        %p224 = pneg %p62
      $region14: #{my_model_forward.1} parent=11 // pred_check_branch
        %226 = sbr.rel (%p224) target = $region16
      $region15: #{my_model_forward.1} parent=11 // pred_region
        _
      $region16: #{my_model_forward.1} parent=11 // pred_fallthru
        _
      // Predicated region
      $region17: #{my_model_forward.1} parent=11 // pred_check
        %p227 = pneg %p83
      $region18: #{my_model_forward.1} parent=11 // pred_check_branch
        %229 = sbr.rel (%p227) target = $region20
      $region19: #{my_model_forward.1} parent=11 // pred_region
        _
      $region20: #{my_model_forward.1} parent=11 // pred_fallthru
        _
      // Predicated region
      $region21: #{my_model_forward.1} parent=11 // pred_check
        %p230 = pneg %p104
      $region22: #{my_model_forward.1} parent=11 // pred_check_branch
        %232 = sbr.rel (%p230) target = $region24
      $region23: #{my_model_forward.1} parent=11 // pred_region
        _
      $region24: #{my_model_forward.1} parent=11 // pred_fallthru
        _
      // Predicated region
      $region25: #{my_model_forward.1} parent=11 // pred_check
        %p233 = pneg %p125
      $region26: #{my_model_forward.1} parent=11 // pred_check_branch
        %235 = sbr.rel (%p233) target = $region28
      $region27: #{my_model_forward.1} parent=11 // pred_region
        _
      $region28: #{my_model_forward.1} parent=11 // pred_fallthru
        _
      // Predicated region
      $region29: #{my_model_forward.1} parent=11 // pred_check
        %p236 = pneg %p146
      $region30: #{my_model_forward.1} parent=11 // pred_check_branch
        %238 = sbr.rel (%p236) target = $region32
      $region31: #{my_model_forward.1} parent=11 // pred_region
        _
      $region32: #{my_model_forward.1} parent=11 // pred_fallthru
        _
    $region12: #{my_model_forward.1} parent=5 // pred_fallthru
      _
    %p239 = scmp.lt.s32.totalorder %s15, 2
    // Predicated region
    $region33: #{my_model_forward.1} parent=5 // pred_check
      %p240 = pneg %p239
    $region34: #{my_model_forward.1} parent=5 // pred_check_branch
      %242 = sbr.rel (%p240) target = $region36
    $region35: #{my_model_forward.1} parent=5 // pred_region
      // Predicated region
      $region37: #{my_model_forward.1} parent=35 // pred_check
        %p243 = pneg %p35
      $region38: #{my_model_forward.1} parent=35 // pred_check_branch
        %245 = sbr.rel (%p243) target = $region40
      $region39: #{my_model_forward.1} parent=35 // pred_region
        %s246 = smul.u32 4, %s15
        %p247 = scmp.lt.s32.totalorder %s246, 7
        %s248 = scalar_select %p247, %s246, 7
        %s249 = smul.addr %s248, 4
        %s250 = scalar_lea.vmem %s0, %s249
        %s251 = smul.u32 4, %s15
      $region40: #{my_model_forward.1} parent=35 // pred_fallthru
        _
    $region36: #{my_model_forward.1} parent=5 // pred_fallthru
      _
    %p252 = scmp.le.s32.totalorder 1, %s15
    %p253 = scmp.lt.s32.totalorder %s15, 3
    %p254 = pnand %p252, %p253
    %p255 = pneg %p254
    // Predicated region
    $region41: #{my_model_forward.1} parent=5 // pred_check
      _
    $region42: #{my_model_forward.1} parent=5 // pred_check_branch
      %257 = sbr.rel (%p254) target = $region44
    $region43: #{my_model_forward.1} parent=5 // pred_region
      %s258 = ssub.s32 %s15, 1
      %s259 = smul.u32 4, %s20
      %p260 = scmp.lt.s32.totalorder %s259, 7
      %s261 = scalar_select %p260, %s259, 7
      %s262 = smul.addr %s261, 4
      %s263 = scalar_lea.vmem %s0, %s262
      %p264 = pneg %p41
      %p265 = pneg %p38
      %p266 = pneg %p62
      %p267 = pneg %p59
      %p268 = pneg %p83
      %p269 = pneg %p80
      %p270 = pneg %p104
      %p271 = pneg %p101
      %p272 = pneg %p125
      %p273 = pneg %p122
      %p274 = pneg %p146
      %p275 = pneg %p143
      %p276 = pneg %p167
      %p277 = pneg %p164
      %p278 = pneg %p188
      %p279 = pneg %p185
      %p280 = pneg %p209
      %p281 = pneg %p206
      %s282 = smul.u32 4, %s20
      %p283 = scmp.lt.s32.totalorder %s282, 7
      %s284 = scalar_select %p283, %s282, 7
      %s285 = smul.addr %s284, 4
      %s286 = scalar_lea.vmem %s0, %s285
      %s287 = smul.u32 4, %s20
      %p289 = scmp.eq.s32.totalorder %s20, 0
      // Predicated region
      $region45: #{my_model_forward.1} parent=43 // pred_check
        %p290 = pneg %p289
      $region46: #{my_model_forward.1} parent=43 // pred_check_branch
        %292 = sbr.rel (%p290) target = $region48
      $region47: #{my_model_forward.1} parent=43 // pred_region
        %vm293 = vcmask 261120
        %294 = vst.msk [vmem:[#allocation2] sm:$0xff] %vm293, 0.0
        %295 = vst.msk [vmem:[#allocation3] sm:$0xff] %vm293, 0.0
      $region48: #{my_model_forward.1} parent=43 // pred_fallthru
        _
      %v296 = vld [vmem:[%s286] sm:$0xf]
      %v297 = vld [vmem:[%s286 + $0x4] sm:$0xf]
      %v298 = vld [vmem:[%s286 + $0x8] sm:$0xf]
      %v299 = vld [vmem:[%s286 + $0xc] sm:$0xf]
      %v300 = vld [vmem:[%s1] sm:$0xf]
      %v301 = vld [vmem:[%s1 + $0x4] sm:$0xf]
      %v302 = vld [vmem:[%s1 + $0x8] sm:$0xf]
      %v303 = vld [vmem:[%s1 + $0xc] sm:$0xf]
      %v304 = vld [vmem:[%s3] sm:$0x1]
      %v306 = vperm.slane %v304, 0
      %v312 = vunpack.c.l.b16 %v296
      %v313 = vunpack.c.l.b16 %v297
      %v314 = vunpack.c.l.b16 %v298
      %v315 = vunpack.c.l.b16 %v299
      %v316 = vpack.c.b16 %v313, %v312
      %v317 = vpack.c.b16 %v315, %v314
      %v322 = vunpack.c.l.b16 %v300
      %v323 = vunpack.c.l.b16 %v301
      %v324 = vunpack.c.l.b16 %v302
      %v325 = vunpack.c.l.b16 %v303
      %v326 = vpack.c.b16 %v323, %v322
      %v327 = vpack.c.b16 %v325, %v324
      %vm330 = vcmask 261120
      %v332 = vsel %vm330, %v316, 0
      %v335 = vsel %vm330, %v317, 0
      %337 = vmatpush.bf16.msra.mxu0 0
      %338 = vmatpush.bf16.msra.mxu0 0
      %339 = vmatpush.bf16.msra.mxu0 0
      %340 = vmatpush.bf16.msra.mxu0 0
      %341 = vmatpush.bf16.msra.mxu0 0
      %342 = vmatpush.bf16.msra.mxu0 0
      %343 = vmatpush.bf16.msra.mxu0 %v327
      %344 = vmatpush.bf16.msra.mxu0 %v326
      %345 = vmatmul.bf16.gmra.mxu0 %v332
      %v346 = vpop.f32.mrf.mxu0
      %v347 = vadd.f32 %v306, %v346
      %v348 = vpop.f32.mrf.mxu0
      %v349 = vadd.f32 %v306, %v348
      %350 = vmatmul.bf16.gmra.mxu0 %v335
      %v351 = vpop.f32.mrf.mxu0
      %v352 = vadd.f32 %v306, %v351
      %v353 = vpop.f32.mrf.mxu0
      %v354 = vadd.f32 %v306, %v353
      %355 = vdwg.mxu0
      %356 = vst [vmem:[#allocation4] sm:$0xff] %v347
      %357 = vst [vmem:[#allocation4 + $0x8] sm:$0xff] %v349
      %358 = vst [vmem:[#allocation4 + $0x10] sm:$0xff] %v352
      %359 = vst [vmem:[#allocation4 + $0x18] sm:$0xff] %v354
      %v360 = vld [vmem:[%s2] sm:$0xf]
      %v361 = vld [vmem:[%s2 + $0x4] sm:$0xf]
      %v362 = vld [vmem:[%s2 + $0x8] sm:$0xf]
      %v363 = vld [vmem:[%s2 + $0xc] sm:$0xf]
      %v364 = vld [vmem:[#allocation2] sm:$0xff]
      %v365 = vld [vmem:[#allocation3] sm:$0xff]
      %v366 = vld [vmem:[#allocation4] sm:$0xff]
      %v367 = vpack.c.bf16 %v364, %v364
      %v372 = vunpack.c.l.b16 %v360
      %v373 = vunpack.c.l.b16 %v361
      %v374 = vunpack.c.l.b16 %v362
      %v375 = vunpack.c.l.b16 %v363
      %v376 = vpack.c.b16 %v373, %v372
      %v377 = vpack.c.b16 %v375, %v374
      %v381 = vsel %vm330, %v367, 0
      %383 = vmatpush.bf16.msra.mxu0 0
      %384 = vmatpush.bf16.msra.mxu0 0
      %385 = vmatpush.bf16.msra.mxu0 0
      %386 = vmatpush.bf16.msra.mxu0 0
      %387 = vmatpush.bf16.msra.mxu0 0
      %388 = vmatpush.bf16.msra.mxu0 0
      %389 = vmatpush.bf16.msra.mxu0 %v377
      %390 = vmatpush.bf16.msra.mxu0 %v376
      %391 = vmatmul.bf16.gmra.mxu0 %v381
      %v392 = vpop.f32.mrf.mxu0
      %v393 = vadd.f32 0.0, %v392
      %v394 = vpop.f32.mrf.mxu0
      %395 = vdwg.mxu0
      %v396 = vadd.f32 %v366, %v393
      %v397 = vxor.u32 %v396, 2147483648
      %v398 = vmul.f32 %v397, 1.442695
      %v399 = vpow.pop %v398
      %v400 = vadd.f32 %v399, 1.0
      %v401 = vrcp.pop %v400
      %v402 = vmul.f32 %v400, %v401
      %v403 = vsub.f32 1.0, %v402
      %v404 = vmul.f32 %v401, %v403
      %v405 = vadd.f32 %v401, %v404
      %vm406 = vweird.f32 %v400
      %vm407 = vweird.f32 %v401
      %vm408 = vmor %vm406, %vm407
      %v409 = vsel %vm408, %v401, %v405
      %v410 = vand.u32 2147483647, %v400
      %vm411 = vcmp.eq.f32.partialorder %v410, 8.507059e+37
      %v412 = vand.u32 %v400, 2147483648
      %v413 = vor.u32 1.1754944e-38, %v412
      %v414 = vsel %vm411, %v413, %v409
      %v415 = vmul.f32 1.0, %v414
      %v416 = vtanh.pop %v396
      %418 = vrot.lane.b32.xlu0 %v365, 32
      %v419 = vpop.permute.xlu0 %418
      %v421 = vmul.f32 %v415, %v419
      %423 = vrot.lane.b32.xlu0 %v416, 32
      %v424 = vpop.permute.xlu0 %423
      %v426 = vmul.f32 %v415, %v424
      %428 = vrot.lane.b32.xlu0 %v426, 32
      %v429 = vpop.permute.xlu0 %428
      %v431 = vadd.f32 %v421, %v429
      %v432 = vtanh.pop %v431
      %434 = vrot.lane.b32.xlu0 %v432, 32
      %v435 = vpop.permute.xlu0 %434
      %v437 = vmul.f32 %v415, %v435
      %s438 = scalar_lea.vmem [#allocation4], 8
      %v439 = vld [vmem:[%s438] sm:$0xff]
      %v440 = vpack.c.bf16 %v437, %v437
      %442 = vrot.lane.b32.xlu0 %v440, 64
      %v443 = vpop.permute.xlu0 %442
      %v445 = vsel %vm330, %v443, 0
      %447 = vmatpush.bf16.msra.mxu0 0
      %448 = vmatpush.bf16.msra.mxu0 0
      %449 = vmatpush.bf16.msra.mxu0 0
      %450 = vmatpush.bf16.msra.mxu0 0
      %451 = vmatpush.bf16.msra.mxu0 0
      %452 = vmatpush.bf16.msra.mxu0 0
      %453 = vmatpush.bf16.msra.mxu0 %v377
      %454 = vmatpush.bf16.msra.mxu0 %v376
      %455 = vmatmul.bf16.gmra.mxu0 %v445
      %v456 = vpop.f32.mrf.mxu0
      %v457 = vadd.f32 0.0, %v456
      %v458 = vpop.f32.mrf.mxu0
      %459 = vdwg.mxu0
      %v460 = vadd.f32 %v439, %v457
      %v461 = vxor.u32 %v460, 2147483648
      %v462 = vmul.f32 %v461, 1.442695
      %v463 = vpow.pop %v462
      %v464 = vadd.f32 %v463, 1.0
      %v465 = vrcp.pop %v464
      %v466 = vmul.f32 %v464, %v465
      %v467 = vsub.f32 1.0, %v466
      %v468 = vmul.f32 %v465, %v467
      %v469 = vadd.f32 %v465, %v468
      %vm470 = vweird.f32 %v464
      %vm471 = vweird.f32 %v465
      %vm472 = vmor %vm470, %vm471
      %v473 = vsel %vm472, %v465, %v469
      %v474 = vand.u32 2147483647, %v464
      %vm475 = vcmp.eq.f32.partialorder %v474, 8.507059e+37
      %v476 = vand.u32 %v464, 2147483648
      %v477 = vor.u32 1.1754944e-38, %v476
      %v478 = vsel %vm475, %v477, %v473
      %v479 = vmul.f32 1.0, %v478
      %v480 = vtanh.pop %v460
      %v481 = vmul.f32 %v479, %v431
      %483 = vrot.lane.b32.xlu0 %v480, 32
      %v484 = vpop.permute.xlu0 %483
      %v486 = vmul.f32 %v479, %v484
      %488 = vrot.lane.b32.xlu0 %v486, 32
      %v489 = vpop.permute.xlu0 %488
      %v491 = vadd.f32 %v481, %v489
      %v492 = vtanh.pop %v491
      %494 = vrot.lane.b32.xlu0 %v492, 32
      %v495 = vpop.permute.xlu0 %494
      %v497 = vmul.f32 %v479, %v495
      %s498 = scalar_lea.vmem [#allocation4], 16
      %v499 = vld [vmem:[%s498] sm:$0xff]
      %v500 = vpack.c.bf16 %v497, %v497
      %502 = vrot.lane.b32.xlu0 %v500, 64
      %v503 = vpop.permute.xlu0 %502
      %v505 = vsel %vm330, %v503, 0
      %507 = vmatpush.bf16.msra.mxu0 0
      %508 = vmatpush.bf16.msra.mxu0 0
      %509 = vmatpush.bf16.msra.mxu0 0
      %510 = vmatpush.bf16.msra.mxu0 0
      %511 = vmatpush.bf16.msra.mxu0 0
      %512 = vmatpush.bf16.msra.mxu0 0
      %513 = vmatpush.bf16.msra.mxu0 %v377
      %514 = vmatpush.bf16.msra.mxu0 %v376
      %515 = vmatmul.bf16.gmra.mxu0 %v505
      %v516 = vpop.f32.mrf.mxu0
      %v517 = vadd.f32 0.0, %v516
      %v518 = vpop.f32.mrf.mxu0
      %519 = vdwg.mxu0
      %v520 = vadd.f32 %v499, %v517
      %v521 = vxor.u32 %v520, 2147483648
      %v522 = vmul.f32 %v521, 1.442695
      %v523 = vpow.pop %v522
      %v524 = vadd.f32 %v523, 1.0
      %v525 = vrcp.pop %v524
      %v526 = vmul.f32 %v524, %v525
      %v527 = vsub.f32 1.0, %v526
      %v528 = vmul.f32 %v525, %v527
      %v529 = vadd.f32 %v525, %v528
      %vm530 = vweird.f32 %v524
      %vm531 = vweird.f32 %v525
      %vm532 = vmor %vm530, %vm531
      %v533 = vsel %vm532, %v525, %v529
      %v534 = vand.u32 2147483647, %v524
      %vm535 = vcmp.eq.f32.partialorder %v534, 8.507059e+37
      %v536 = vand.u32 %v524, 2147483648
      %v537 = vor.u32 1.1754944e-38, %v536
      %v538 = vsel %vm535, %v537, %v533
      %v539 = vmul.f32 1.0, %v538
      %v540 = vtanh.pop %v520
      %v541 = vmul.f32 %v539, %v491
      %543 = vrot.lane.b32.xlu0 %v540, 32
      %v544 = vpop.permute.xlu0 %543
      %v546 = vmul.f32 %v539, %v544
      %548 = vrot.lane.b32.xlu0 %v546, 32
      %v549 = vpop.permute.xlu0 %548
      %v551 = vadd.f32 %v541, %v549
      %v552 = vtanh.pop %v551
      %554 = vrot.lane.b32.xlu0 %v552, 32
      %v555 = vpop.permute.xlu0 %554
      %v557 = vmul.f32 %v539, %v555
      %s558 = scalar_lea.vmem [#allocation4], 24
      %v559 = vld [vmem:[%s558] sm:$0xff]
      %v560 = vpack.c.bf16 %v557, %v557
      %562 = vrot.lane.b32.xlu0 %v560, 64
      %v563 = vpop.permute.xlu0 %562
      %v565 = vsel %vm330, %v563, 0
      %567 = vmatpush.bf16.msra.mxu0 0
      %568 = vmatpush.bf16.msra.mxu0 0
      %569 = vmatpush.bf16.msra.mxu0 0
      %570 = vmatpush.bf16.msra.mxu0 0
      %571 = vmatpush.bf16.msra.mxu0 0
      %572 = vmatpush.bf16.msra.mxu0 0
      %573 = vmatpush.bf16.msra.mxu0 %v377
      %574 = vmatpush.bf16.msra.mxu0 %v376
      %575 = vmatmul.bf16.gmra.mxu0 %v565
      %v576 = vpop.f32.mrf.mxu0
      %v577 = vadd.f32 0.0, %v576
      %v578 = vpop.f32.mrf.mxu0
      %579 = vdwg.mxu0
      %v580 = vadd.f32 %v559, %v577
      %v581 = vxor.u32 %v580, 2147483648
      %v582 = vmul.f32 %v581, 1.442695
      %v583 = vpow.pop %v582
      %v584 = vadd.f32 %v583, 1.0
      %v585 = vrcp.pop %v584
      %v586 = vmul.f32 %v584, %v585
      %v587 = vsub.f32 1.0, %v586
      %v588 = vmul.f32 %v585, %v587
      %v589 = vadd.f32 %v585, %v588
      %vm590 = vweird.f32 %v584
      %vm591 = vweird.f32 %v585
      %vm592 = vmor %vm590, %vm591
      %v593 = vsel %vm592, %v585, %v589
      %v594 = vand.u32 2147483647, %v584
      %vm595 = vcmp.eq.f32.partialorder %v594, 8.507059e+37
      %v596 = vand.u32 %v584, 2147483648
      %v597 = vor.u32 1.1754944e-38, %v596
      %v598 = vsel %vm595, %v597, %v593
      %v599 = vmul.f32 1.0, %v598
      %v600 = vtanh.pop %v580
      %v601 = vmul.f32 %v599, %v551
      %603 = vrot.lane.b32.xlu0 %v600, 32
      %v604 = vpop.permute.xlu0 %603
      %v606 = vmul.f32 %v599, %v604
      %608 = vrot.lane.b32.xlu0 %v606, 32
      %v609 = vpop.permute.xlu0 %608
      %v611 = vadd.f32 %v601, %v609
      %v612 = vtanh.pop %v611
      %614 = vrot.lane.b32.xlu0 %v612, 32
      %v615 = vpop.permute.xlu0 %614
      %v617 = vmul.f32 %v599, %v615
      %619 = vrot.lane.b32.xlu0 %v617, 64
      %v620 = vpop.permute.xlu0 %619
      %622 = vst.msk [vmem:[#allocation2] sm:$0xff] %vm330, %v620
      %624 = vrot.lane.b32.xlu0 %v611, 96
      %v625 = vpop.permute.xlu0 %624
      %627 = vst.msk [vmem:[#allocation3] sm:$0xff] %vm330, %v625
      %p628 = scmp.eq.s32.totalorder %s20, 1
      // Predicated region
      $region49: #{my_model_forward.1} parent=43 // pred_check
        %p629 = pneg %p628
      $region50: #{my_model_forward.1} parent=43 // pred_check_branch
        %631 = sbr.rel (%p629) target = $region52
      $region51: #{my_model_forward.1} parent=43 // pred_region
        %632 = vst.msk [vmem:[%s6] sm:$0xff] %vm330, %v620
        %633 = vst.msk [vmem:[%s7] sm:$0xff] %vm330, %v625
        %v634 = vpack.c.bf16 %v617, %v617
        %v635 = vld [vmem:[%s4] sm:$0xf]
        %v636 = vld [vmem:[%s4 + $0x4] sm:$0xf]
        %v637 = vld [vmem:[%s4 + $0x8] sm:$0xf]
        %v638 = vld [vmem:[%s4 + $0xc] sm:$0xf]
        %v639 = vld [vmem:[%s5] sm:$0x1]
        %v641 = vperm.slane %v639, 0
        %644 = vrot.lane.b32.xlu0 %v634, 64
        %v645 = vpop.permute.xlu0 %644
        %v650 = vunpack.c.l.b16 %v635
        %v651 = vunpack.c.l.b16 %v636
        %v652 = vunpack.c.l.b16 %v637
        %v653 = vunpack.c.l.b16 %v638
        %v654 = vpack.c.b16 %v651, %v650
        %v655 = vpack.c.b16 %v653, %v652
        %v659 = vsel %vm330, %v645, 0
        %661 = vmatpush.bf16.msra.mxu0 0
        %662 = vmatpush.bf16.msra.mxu0 0
        %663 = vmatpush.bf16.msra.mxu0 0
        %664 = vmatpush.bf16.msra.mxu0 0
        %665 = vmatpush.bf16.msra.mxu0 0
        %666 = vmatpush.bf16.msra.mxu0 0
        %667 = vmatpush.bf16.msra.mxu0 %v655
        %668 = vmatpush.bf16.msra.mxu0 %v654
        %669 = vmatmul.bf16.gmra.mxu0 %v659
        %v670 = vpop.f32.mrf.mxu0
        %v671 = vadd.f32 %v641, %v670
        %v672 = vpop.f32.mrf.mxu0
        %673 = vdwg.mxu0
        %674 = vst [vmem:[%s8] sm:$0xff] %v671
      $region52: #{my_model_forward.1} parent=43 // pred_fallthru
        _
      // Predicated region
      $region53: #{my_model_forward.1} parent=43 // pred_check
        %p675 = pneg %p164
      $region54: #{my_model_forward.1} parent=43 // pred_check_branch
        %677 = sbr.rel (%p675) target = $region56
      $region55: #{my_model_forward.1} parent=43 // pred_region
        _
      $region56: #{my_model_forward.1} parent=43 // pred_fallthru
        _
      // Predicated region
      $region57: #{my_model_forward.1} parent=43 // pred_check
        %p678 = pneg %p185
      $region58: #{my_model_forward.1} parent=43 // pred_check_branch
        %680 = sbr.rel (%p678) target = $region60
      $region59: #{my_model_forward.1} parent=43 // pred_region
        _
      $region60: #{my_model_forward.1} parent=43 // pred_fallthru
        _
      // Predicated region
      $region61: #{my_model_forward.1} parent=43 // pred_check
        %p681 = pneg %p206
      $region62: #{my_model_forward.1} parent=43 // pred_check_branch
        %683 = sbr.rel (%p681) target = $region64
      $region63: #{my_model_forward.1} parent=43 // pred_region
        _
      $region64: #{my_model_forward.1} parent=43 // pred_fallthru
        _
      // Predicated region
      $region65: #{my_model_forward.1} parent=43 // pred_check
        %p684 = pneg %p164
      $region66: #{my_model_forward.1} parent=43 // pred_check_branch
        %686 = sbr.rel (%p684) target = $region68
      $region67: #{my_model_forward.1} parent=43 // pred_region
        _
      $region68: #{my_model_forward.1} parent=43 // pred_fallthru
        _
      // Predicated region
      $region69: #{my_model_forward.1} parent=43 // pred_check
        %p687 = pneg %p185
      $region70: #{my_model_forward.1} parent=43 // pred_check_branch
        %689 = sbr.rel (%p687) target = $region72
      $region71: #{my_model_forward.1} parent=43 // pred_region
        _
      $region72: #{my_model_forward.1} parent=43 // pred_fallthru
        _
      // Predicated region
      $region73: #{my_model_forward.1} parent=43 // pred_check
        %p690 = pneg %p206
      $region74: #{my_model_forward.1} parent=43 // pred_check_branch
        %692 = sbr.rel (%p690) target = $region76
      $region75: #{my_model_forward.1} parent=43 // pred_region
        _
      $region76: #{my_model_forward.1} parent=43 // pred_fallthru
        _
    $region44: #{my_model_forward.1} parent=5 // pred_fallthru
      _
    %p693 = scmp.le.s32.totalorder 2, %s15
    // Predicated region
    $region77: #{my_model_forward.1} parent=5 // pred_check
      %p694 = pneg %p693
    $region78: #{my_model_forward.1} parent=5 // pred_check_branch
      %696 = sbr.rel (%p694) target = $region80
    $region79: #{my_model_forward.1} parent=5 // pred_region
      %s697 = ssub.s32 %s15, 2
    $region80: #{my_model_forward.1} parent=5 // pred_fallthru
      _
  $region6: #{my_model_forward.1} parent=0 // loop_footer
    %s19 = sadd.s32 1, %s15
  $region7: #{my_model_forward.1} parent=0 // loop_footer_branch
    %14 = sbr.rel target = $region3
  $region8: #{my_model_forward.1} parent=0 // loop_exit
    _

</llo_original>
